<compile_context>
chip_gen: v7x
topology: tpu7x:2x2x1
jax: 0.10.0
libtpu: 0.0.40
codegen_flags: <defaults>
</compile_context>

<pallas_src>
import functools

import jax
import jax.numpy as jnp
import numpy as np
from jax.experimental import pallas as pl
from jax.experimental.pallas import tpu as pltpu


# ---------------------------------------------------------------------------
# Shared gate math on the fused (B, 7H) pre-activation.
# Lane layout (gate-major): [input, forget, output, input_bar, forget_bar]
# (sigmoid slab, lanes 0..5H), pre_c (tanh, 5H..6H), decay (softplus, 6H..7H).
# ---------------------------------------------------------------------------
def _compute_gates(z, hidden_dim, beta):
    H = hidden_dim
    sig = jax.nn.sigmoid(z[:, : 5 * H])          # one EUP slab for 5 gates
    gate_input      = sig[:, 0 * H:1 * H]
    gate_forget     = sig[:, 1 * H:2 * H]
    gate_output     = sig[:, 2 * H:3 * H]
    gate_input_bar  = sig[:, 3 * H:4 * H]
    gate_forget_bar = sig[:, 4 * H:5 * H]
    gate_pre_c      = jnp.tanh(z[:, 5 * H:6 * H])

    # Softplus with beta, matching torch.nn.Softplus (threshold=20 on beta*x).
    z_decay = z[:, 6 * H:7 * H]
    if beta == 1.0:
        gate_decay = jnp.where(z_decay > 20.0, z_decay,
                               jnp.log1p(jnp.exp(z_decay)))
    else:
        bz = beta * z_decay
        gate_decay = jnp.where(bz > 20.0, z_decay,
                               jnp.log1p(jnp.exp(bz)) * (1.0 / beta))

    return (gate_input, gate_forget, gate_output, gate_input_bar,
            gate_forget_bar, gate_pre_c, gate_decay)


# ---------------------------------------------------------------------------
# Parameter packing (hoist out of any per-step call site).
# ---------------------------------------------------------------------------
def _pack_weights(params):
    """(7, E+H, H) -> (E+H, 7H); (7, 1, H) -> (1, 7H). Layout change only."""
    W = params["W"]
    b = params["b"]
    n_gates, d_in, H = W.shape
    W_cat = jnp.transpose(W, (1, 0, 2)).reshape(d_in, n_gates * H)
    b_cat = b.reshape(1, n_gates * H)
    return W_cat, b_cat


def pack_params(params):
    """Precompute the event-type contribution table and recurrent weights.

    Returns dict with:
      "table": (V, 7H)  = embedding @ W_x + b   (includes bias)
      "W_h":   (H, 7H)  recurrent weights
    """
    emb = params["embedding"]                     # (V, E)
    V, E = emb.shape
    W_cat, b_cat = _pack_weights(params)          # (E+H, 7H), (1, 7H)
    W_x = W_cat[:E]                               # (E, 7H)
    W_h = W_cat[E:]                               # (H, 7H)
    table = emb @ W_x + b_cat                     # (V, 7H)
    return {"table": table, "W_h": W_h}


# ---------------------------------------------------------------------------
# Kernel 1: single fused cell step (matches ContTimeLSTMCell.forward).
# z = hidden @ W_h + (emb(ev) @ W_x + b)   -- the x-part is the gathered table row.
# ---------------------------------------------------------------------------
def _cont_time_lstm_step_kernel(h_ref, xproj_ref, wh_ref, c_ref, cbar_ref,
                                out_ref, *, hidden_dim: int, beta: float):
    """h_ref: (B, H), xproj_ref: (B, 7H), wh_ref: (H, 7H),
    c_ref/cbar_ref: (B, H), out_ref: (B, 4H) packed [cell, cell_bar, decay, out]."""
    H = hidden_dim
    z = jnp.dot(h_ref[...], wh_ref[...],
                preferred_element_type=jnp.float32) + xproj_ref[...]

    (gi, gf, go, gib, gfb, gpc, gd) = _compute_gates(z, H, beta)

    cell_i = gf * c_ref[...] + gi * gpc
    cbar_i = gfb * cbar_ref[...] + gib * gpc

    # Lane-dense packed store: (B, 4H) written in one shot.
    out_ref[...] = jnp.concatenate([cell_i, cbar_i, gd, go], axis=1)


def cont_time_lstm_forward(event_types_i, hidden_i_minus, cell_i_minus,
                           cell_bar_i_minus_1, params, *, beta: float = 1.0,
                           packed=None):
    """JAX wrapper reproducing ContTimeLSTMCell.forward.

    Returns (cell_i, cell_bar_i, gate_decay, gate_output), each (B, hidden_dim).
    Pass `packed = pack_params(params)` to avoid re-packing weights per call.
    """
    if packed is None:
        packed = pack_params(params)
    table, W_h = packed["table"], packed["W_h"]

    # Tiny gather in plain JAX: (B, 7H) event-type contribution incl. bias.
    xproj = jnp.take(table, event_types_i, axis=0).astype(jnp.float32)

    B, H = hidden_i_minus.shape
    kernel = functools.partial(_cont_time_lstm_step_kernel,
                               hidden_dim=H, beta=float(beta))

    vmem = pl.BlockSpec(memory_space=pltpu.MemorySpace.VMEM)
    out_packed = pl.pallas_call(
        kernel,
        out_shape=jax.ShapeDtypeStruct((B, 4 * H), jnp.float32),
        in_specs=[vmem, vmem, vmem, vmem, vmem],
        out_specs=pl.BlockSpec(memory_space=pltpu.MemorySpace.VMEM),
    )(hidden_i_minus.astype(jnp.float32), xproj, W_h,
      cell_i_minus.astype(jnp.float32), cell_bar_i_minus_1.astype(jnp.float32))

    cell_i = out_packed[:, 0 * H:1 * H]
    cbar_i = out_packed[:, 1 * H:2 * H]
    gd     = out_packed[:, 2 * H:3 * H]
    go     = out_packed[:, 3 * H:4 * H]
    return cell_i, cbar_i, gd, go


# ---------------------------------------------------------------------------
# Kernel 2: whole event sequence, time-blocked.  Each grid step processes
# `time_block` events with an unrolled inner loop; state is carried across
# chunks in VMEM scratch; dtimes live in SMEM via scalar prefetch.
# ---------------------------------------------------------------------------
def _cont_time_lstm_seq_kernel(dt_ref,                        # scalar-prefetch SMEM (T_pad,)
                               xproj_ref, wh_ref,             # (Tt,B,7H), (H,7H)
                               h0_ref, c0_ref, cbar0_ref,     # (B,H) x 3
                               out_ref,                       # (Tt,B,4H)
                               hN_ref, cN_ref, cbarN_ref,     # (B,H) x 3 final state
                               h_scr, c_scr, cbar_scr,        # (B,H) x 3 scratch
                               *, hidden_dim: int, beta: float,
                               time_block: int, seq_len: int):
    H = hidden_dim
    chunk = pl.program_id(0)

    @pl.when(chunk == 0)
    def _():
        h_scr[...] = h0_ref[...]
        c_scr[...] = c0_ref[...]
        cbar_scr[...] = cbar0_ref[...]

    wh = wh_ref[...]                              # resident recurrent weights

    def step(i, carry):
        t = chunk * time_block + i                # global event index

        # Fused pre-activation: hidden @ W_h + (x_t @ W_x + b)   -> (B, 7H)
        z = jnp.dot(h_scr[...], wh,
                    preferred_element_type=jnp.float32) + xproj_ref[i]

        (gi, gf, go, gib, gfb, gpc, gd) = _compute_gates(z, H, beta)

        cell_i = gf * c_scr[...] + gi * gpc
        cbar_i = gfb * cbar_scr[...] + gib * gpc

        # Lane-dense packed per-event output.
        out_ref[i] = jnp.concatenate([cell_i, cbar_i, gd, go], axis=1)

        # Decay to the next event time (Equation (7)); dt is a scalar SMEM read.
        dt = dt_ref[t]
        c_dec = cbar_i + (cell_i - cbar_i) * jnp.exp(-gd * dt)
        h_new = go * jnp.tanh(c_dec)

        # Padded tail steps (t >= seq_len) must not advance the state.
        valid = t < seq_len
        h_scr[...] = jnp.where(valid, h_new, h_scr[...])
        c_scr[...] = jnp.where(valid, c_dec, c_scr[...])
        cbar_scr[...] = jnp.where(valid, cbar_i, cbar_scr[...])
        return carry

    jax.lax.fori_loop(0, time_block, step, 0, unroll=True)

    # Final decayed state (resident output; last chunk's write is kept).
    hN_ref[...] = h_scr[...]
    cN_ref[...] = c_scr[...]
    cbarN_ref[...] = cbar_scr[...]


def cont_time_lstm_sequence(event_types_seq, dtimes, h0, c0, cbar0, params,
                            *, beta: float = 1.0, time_block: int = 8,
                            packed=None):
    """Run the continuous-time LSTM over a whole event sequence in one kernel.

    event_types_seq: (T, B) int32, dtimes: (T,) f32 (time to next event).
    Returns:
      outs:  (T, B, 4H) packed per-event [cell_i, cell_bar_i, decay, output]
      h_fin, c_fin, cbar_fin: (B, H) decayed state after the last event.
    """
    if packed is None:
        packed = pack_params(params)
    table, W_h = packed["table"], packed["W_h"]

    B, H = h0.shape
    T = event_types_seq.shape[0]
    Tt = max(1, min(int(time_block), T))
    num_chunks = -(-T // Tt)
    T_pad = num_chunks * Tt

    # Event-type contribution per step (includes bias): (T, B, 7H).
    xproj = jnp.take(table, event_types_seq, axis=0).astype(jnp.float32)
    dt_f32 = dtimes.astype(jnp.float32)
    if T_pad != T:
        xproj = jnp.pad(xproj, ((0, T_pad - T), (0, 0), (0, 0)))
        dt_f32 = jnp.pad(dt_f32, (0, T_pad - T))

    kernel = functools.partial(_cont_time_lstm_seq_kernel,
                               hidden_dim=H, beta=float(beta),
                               time_block=Tt, seq_len=T)

    outs, h_fin, c_fin, cbar_fin = pl.pallas_call(
        kernel,
        out_shape=(
            jax.ShapeDtypeStruct((T_pad, B, 4 * H), jnp.float32),
            jax.ShapeDtypeStruct((B, H), jnp.float32),
            jax.ShapeDtypeStruct((B, H), jnp.float32),
            jax.ShapeDtypeStruct((B, H), jnp.float32),
        ),
        grid_spec=pltpu.PrefetchScalarGridSpec(
            num_scalar_prefetch=1,                 # dtimes -> SMEM
            grid=(num_chunks,),
            in_specs=[
                pl.BlockSpec((Tt, B, 7 * H), lambda c, dt: (c, 0, 0)),  # xproj chunk
                pl.BlockSpec((H, 7 * H), lambda c, dt: (0, 0)),         # W_h resident
                pl.BlockSpec((B, H), lambda c, dt: (0, 0)),             # h0 resident
                pl.BlockSpec((B, H), lambda c, dt: (0, 0)),             # c0 resident
                pl.BlockSpec((B, H), lambda c, dt: (0, 0)),             # cbar0 resident
            ],
            out_specs=(
                pl.BlockSpec((Tt, B, 4 * H), lambda c, dt: (c, 0, 0)),  # per-event out
                pl.BlockSpec((B, H), lambda c, dt: (0, 0)),             # final h
                pl.BlockSpec((B, H), lambda c, dt: (0, 0)),             # final c
                pl.BlockSpec((B, H), lambda c, dt: (0, 0)),             # final cbar
            ),
            scratch_shapes=[pltpu.VMEM((B, H), jnp.float32),
                            pltpu.VMEM((B, H), jnp.float32),
                            pltpu.VMEM((B, H), jnp.float32)],
        ),
        compiler_params=pltpu.CompilerParams(
            dimension_semantics=("arbitrary",)),
    )(dt_f32, xproj, W_h, h0.astype(jnp.float32), c0.astype(jnp.float32),
      cbar0.astype(jnp.float32))

    return outs[:T], h_fin, c_fin, cbar_fin


# ---------------------------------------------------------------------------
# Params + pure-JAX references
# ---------------------------------------------------------------------------
def init_params(key, embed_dim, hidden_dim, num_event_types_pad, pad_token_id):
    """Deterministic synthetic parameter init (shapes match the PyTorch module)."""
    k_emb, k_w, k_b = jax.random.split(key, 3)
    emb = jax.random.normal(k_emb, (num_event_types_pad, embed_dim),
                            dtype=jnp.float32) * 0.1
    emb = emb.at[pad_token_id].set(0.0)      # padding_idx row of nn.Embedding is zero
    d_in = hidden_dim + embed_dim
    W = jax.random.normal(k_w, (7, d_in, hidden_dim), dtype=jnp.float32) * 0.1
    b = jax.random.normal(k_b, (7, 1, hidden_dim), dtype=jnp.float32) * 0.1
    return {"embedding": emb, "W": W, "b": b}


def _reference_forward(event_types_i, hidden_i_minus, cell_i_minus,
                       cell_bar_i_minus_1, params, beta=1.0):
    """Pure-JAX reference mirroring the PyTorch forward."""
    emb = params["embedding"]
    W, b = params["W"], params["b"]
    x_i = jnp.take(emb, event_types_i, axis=0)
    x_cat = jnp.concatenate([x_i, hidden_i_minus], axis=1)
    z = [x_cat @ W[k] + b[k] for k in range(7)]
    gi, gf, go = jax.nn.sigmoid(z[0]), jax.nn.sigmoid(z[1]), jax.nn.sigmoid(z[2])
    gib, gfb = jax.nn.sigmoid(z[3]), jax.nn.sigmoid(z[4])
    gpc = jnp.tanh(z[5])
    bz = beta * z[6]
    gd = jnp.where(bz > 20.0, z[6], jnp.log1p(jnp.exp(bz)) / beta)
    cell_i = gf * cell_i_minus + gi * gpc
    cell_bar_i = gfb * cell_bar_i_minus_1 + gib * gpc
    return cell_i, cell_bar_i, gd, go


def _reference_sequence(event_types_seq, dtimes, h0, c0, cbar0, params, beta=1.0):
    """lax.scan over per-step forward + decay (the module's `decay` method)."""
    def step(carry, inp):
        h, c, cbar = carry
        ev, dt = inp
        cell_i, cbar_i, gd, go = _reference_forward(ev, h, c, cbar, params, beta)
        c_dec = cbar_i + (cell_i - cbar_i) * jnp.exp(-gd * dt)
        h_new = go * jnp.tanh(c_dec)
        out = jnp.concatenate([cell_i, cbar_i, gd, go], axis=1)
        return (h_new, c_dec, cbar_i), out

    (h_f, c_f, cbar_f), outs = jax.lax.scan(
        step, (h0, c0, cbar0), (event_types_seq, dtimes))
    return outs, h_f, c_f, cbar_f                               # (T, B, 4H), finals


# ---------------------------------------------------------------------------
if __name__ == "__main__":
    batch = 8
    embed_dim = 16
    hidden_dim = 32
    num_event_types_pad = 6
    pad_token_id = 0
    seq_len = 12
    time_block = 8          # T=12 -> 2 chunks, exercises the padded-tail masking

    key = jax.random.PRNGKey(0)
    keys = jax.random.split(key, 8)

    params = init_params(keys[0], embed_dim, hidden_dim,
                         num_event_types_pad, pad_token_id)
    packed = pack_params(params)     # hoisted weight packing / (V,7H) table

    event_types_i = jax.random.randint(keys[1], (batch,), 0, num_event_types_pad)
    hidden_i_minus = jax.random.normal(keys[2], (batch, hidden_dim), jnp.float32)
    cell_i_minus = jax.random.normal(keys[3], (batch, hidden_dim), jnp.float32)
    cell_bar_i_minus_1 = jax.random.normal(keys[4], (batch, hidden_dim), jnp.float32)

    # --- single fused step (matches the module's forward), beta=1 and beta=2 ---
    for beta in (1.0, 2.0):
        outs = cont_time_lstm_forward(event_types_i, hidden_i_minus, cell_i_minus,
                                      cell_bar_i_minus_1, params, beta=beta,
                                      packed=packed)
        outs = jax.block_until_ready(outs)
        refs = _reference_forward(event_types_i, hidden_i_minus, cell_i_minus,
                                  cell_bar_i_minus_1, params, beta=beta)
        for o, r in zip(outs, refs):
            np.testing.assert_allclose(np.asarray(o), np.asarray(r),
                                       rtol=1e-3, atol=1e-3)

    # --- whole event sequence in one time-blocked kernel (forward + decay) ---
    event_types_seq = jax.random.randint(keys[5], (seq_len, batch),
                                         0, num_event_types_pad)
    dtimes = jax.random.uniform(keys[6], (seq_len,), jnp.float32, 0.05, 1.0)

    seq_out, h_fin, c_fin, cbar_fin = cont_time_lstm_sequence(
        event_types_seq, dtimes, hidden_i_minus, cell_i_minus,
        cell_bar_i_minus_1, params, beta=1.0, time_block=time_block,
        packed=packed)
    seq_out = jax.block_until_ready(seq_out)

    ref_out, h_ref, c_ref, cbar_ref = _reference_sequence(
        event_types_seq, dtimes, hidden_i_minus, cell_i_minus,
        cell_bar_i_minus_1, params, beta=1.0)

    np.testing.assert_allclose(np.asarray(seq_out), np.asarray(ref_out),
                               rtol=5e-3, atol=5e-3)
    np.testing.assert_allclose(np.asarray(h_fin), np.asarray(h_ref),
                               rtol=5e-3, atol=5e-3)
    np.testing.assert_allclose(np.asarray(c_fin), np.asarray(c_ref),
                               rtol=5e-3, atol=5e-3)
    np.testing.assert_allclose(np.asarray(cbar_fin), np.asarray(cbar_ref),
                               rtol=5e-3, atol=5e-3)

    print("KERNEL_OK")
</pallas_src>

<mosaic_0001>
module attributes {stable_mosaic.version = 11 : i64} {
  func.func @_cont_time_lstm_step_kernel(%arg0: memref<8x32xf32, #tpu.memory_space<vmem>>, %arg1: memref<8x224xf32, #tpu.memory_space<vmem>>, %arg2: memref<32x224xf32, #tpu.memory_space<vmem>>, %arg3: memref<8x32xf32, #tpu.memory_space<vmem>>, %arg4: memref<8x32xf32, #tpu.memory_space<vmem>>, %arg5: memref<8x128xf32, #tpu.memory_space<vmem>>) attributes {dimension_semantics = [], scalar_prefetch = 0 : i64, scratch_operands = 0 : i64, tpu.core_type = #tpu.core_type<tc>} {
    %c0 = arith.constant 0 : index
    %c0_0 = arith.constant 0 : index
    %0 = vector.load %arg0[%c0, %c0_0] : memref<8x32xf32, #tpu.memory_space<vmem>>, vector<8x32xf32>
    %c0_1 = arith.constant 0 : index
    %c0_2 = arith.constant 0 : index
    %1 = vector.load %arg2[%c0_1, %c0_2] : memref<32x224xf32, #tpu.memory_space<vmem>>, vector<32x224xf32>
    %cst = arith.constant dense<0.000000e+00> : vector<8x224xf32>
    %2 = tpu.matmul %0, %1, %cst {dimension_numbers = #tpu.dot_dimension_numbers<[1], [0], [0], [1], [0, 0, 1, 1], [], []>} : vector<8x32xf32>, vector<32x224xf32>, vector<8x224xf32> -> vector<8x224xf32>
    %c0_3 = arith.constant 0 : index
    %c0_4 = arith.constant 0 : index
    %3 = vector.load %arg1[%c0_3, %c0_4] : memref<8x224xf32, #tpu.memory_space<vmem>>, vector<8x224xf32>
    %4 = arith.addf %2, %3 : vector<8x224xf32>
    %5 = vector.extract_strided_slice %4 {offsets = [0, 0], sizes = [8, 160], strides = [1, 1]} : vector<8x224xf32> to vector<8x160xf32>
    %6 = arith.negf %5 : vector<8x160xf32>
    %7 = math.exp %6 : vector<8x160xf32>
    %cst_5 = arith.constant 1.000000e+00 : f32
    %8 = vector.broadcast %cst_5 : f32 to vector<8x160xf32>
    %9 = arith.addf %8, %7 : vector<8x160xf32>
    %10 = arith.divf %8, %9 : vector<8x160xf32>
    %11 = vector.extract_strided_slice %10 {offsets = [0, 0], sizes = [8, 32], strides = [1, 1]} : vector<8x160xf32> to vector<8x32xf32>
    %12 = vector.extract_strided_slice %10 {offsets = [0, 32], sizes = [8, 32], strides = [1, 1]} : vector<8x160xf32> to vector<8x32xf32>
    %13 = vector.extract_strided_slice %10 {offsets = [0, 64], sizes = [8, 32], strides = [1, 1]} : vector<8x160xf32> to vector<8x32xf32>
    %14 = vector.extract_strided_slice %10 {offsets = [0, 96], sizes = [8, 32], strides = [1, 1]} : vector<8x160xf32> to vector<8x32xf32>
    %15 = vector.extract_strided_slice %10 {offsets = [0, 128], sizes = [8, 32], strides = [1, 1]} : vector<8x160xf32> to vector<8x32xf32>
    %16 = vector.extract_strided_slice %4 {offsets = [0, 160], sizes = [8, 32], strides = [1, 1]} : vector<8x224xf32> to vector<8x32xf32>
    %17 = math.tanh %16 : vector<8x32xf32>
    %18 = vector.extract_strided_slice %4 {offsets = [0, 192], sizes = [8, 32], strides = [1, 1]} : vector<8x224xf32> to vector<8x32xf32>
    %cst_6 = arith.constant 2.000000e+01 : f32
    %19 = vector.broadcast %cst_6 : f32 to vector<8x32xf32>
    %20 = arith.cmpf ogt, %18, %19 : vector<8x32xf32>
    %21 = math.exp %18 : vector<8x32xf32>
    %22 = math.log1p %21 : vector<8x32xf32>
    %23 = arith.select %20, %18, %22 : vector<8x32xi1>, vector<8x32xf32>
    %c0_7 = arith.constant 0 : index
    %c0_8 = arith.constant 0 : index
    %24 = vector.load %arg3[%c0_7, %c0_8] : memref<8x32xf32, #tpu.memory_space<vmem>>, vector<8x32xf32>
    %25 = arith.mulf %12, %24 : vector<8x32xf32>
    %26 = arith.mulf %11, %17 : vector<8x32xf32>
    %27 = arith.addf %25, %26 : vector<8x32xf32>
    %c0_9 = arith.constant 0 : index
    %c0_10 = arith.constant 0 : index
    %28 = vector.load %arg4[%c0_9, %c0_10] : memref<8x32xf32, #tpu.memory_space<vmem>>, vector<8x32xf32>
    %29 = arith.mulf %15, %28 : vector<8x32xf32>
    %30 = arith.mulf %14, %17 : vector<8x32xf32>
    %31 = arith.addf %29, %30 : vector<8x32xf32>
    %32 = tpu.concatenate %27, %31, %23, %13 in 1 : vector<8x32xf32>, vector<8x32xf32>, vector<8x32xf32>, vector<8x32xf32> -> vector<8x128xf32>
    %c0_11 = arith.constant 0 : index
    %c0_12 = arith.constant 0 : index
    %33 = vector.load %arg5[%c0_11, %c0_12] : memref<8x128xf32, #tpu.memory_space<vmem>>, vector<8x128xf32>
    tpu.vector_store %arg5[%c0_11, %c0_12], %32 {strides = array<i32>} : memref<8x128xf32, #tpu.memory_space<vmem>>, vector<8x128xf32>,
    return
  }
}

</mosaic_0001>

<llo_original>
// kernel: tpu_custom_call.1
$region0: #{tpu_custom_call.1}
  #allocation0 [shape = 'u32[]', space=smem, size = 0x4, offset = 0x4, fixed_abs, tag = 'smem constant byte address 0x4 - core index']
  #allocation1 [shape = 'u32[144,128]{1,0:T(1,128)}', space=vmem, size = 0x12000, scoped, tag = 'internal scratch']
  %s0 = inlined_call_operand.hbm [shape: f32[8,32], index: 0, kind: input, shape index: {}]
  %s1 = inlined_call_operand.hbm [shape: f32[8,224], index: 1, kind: input, shape index: {}]
  %s2 = inlined_call_operand.hbm [shape: f32[32,224], index: 2, kind: input, shape index: {}]
  %s3 = inlined_call_operand.vmem [shape: f32[8,32], index: 3, kind: input, shape index: {}]
  %s4 = inlined_call_operand.hbm [shape: f32[8,32], index: 4, kind: input, shape index: {}]
  %s5 = inlined_call_operand.hbm [shape: f32[8,128], index: 5, kind: output, shape index: {}]
  %s6 = sld [smem:[#allocation0]]
  $region46: #{tpu_custom_call.1} parent=0
    _
  %s8 = ssub.s32 1, %s6
  %s9 = scalar_select 0, %s8, %s6
  $region1: #{tpu_custom_call.1} parent=0
    #allocation2 [shape = 'u8[4096]{0}', space=vmem, size = 0x1000, scoped, tag = 'input window, operand 0, single buffered']
    #allocation3 [shape = 's32[1]{0}', space=sflag, size = 0x4, scoped, tag = 'scoped memory for tpu_custom_call.1']
    #allocation4 [shape = 's32[1]{0}', space=sflag, size = 0x4, scoped, tag = 'scoped memory for tpu_custom_call.1']
    #allocation5 [shape = 'u8[8192]{0}', space=vmem, size = 0x2000, scoped, tag = 'input window, operand 1, single buffered']
    #allocation6 [shape = 's32[1]{0}', space=sflag, size = 0x4, scoped, tag = 'scoped memory for tpu_custom_call.1']
    #allocation7 [shape = 'u8[32768]{0}', space=vmem, size = 0x8000, scoped, tag = 'input window, operand 2, single buffered']
    #allocation8 [shape = 'u8[4096]{0}', space=vmem, size = 0x1000, scoped, tag = 'input window, operand 4, single buffered']
    #allocation9 [shape = 's32[1]{0}', space=sflag, size = 0x4, scoped, tag = 'scoped memory for tpu_custom_call.1']
    #allocation10 [shape = 'u8[4096]{0}', space=vmem, size = 0x1000, scoped, tag = 'output window, operand 0, single buffered']
    %10 = vsyncpa [#allocation3], 0
    %11 = vsyncpa [#allocation6], 0
    %12 = vsyncpa [#allocation9], 0
    %13 = vsyncpa [#allocation4], 0
    // Predicated region
    $region2: #{tpu_custom_call.1} parent=1 // pred_check
      _
    $region3: #{tpu_custom_call.1} parent=1 // pred_check_branch
      %15 = sbr.rel (0) target = $region5
    $region4: #{tpu_custom_call.1} parent=1 // pred_region
      %s17 = ssub.s32 128, 128
      %18 = vsyncadd [#allocation3], %s17
      %s20 = sshll.u32 [#allocation2], 4
      %s21 = int_to_ptr.vmem [resolvable:$true] %s20
      %23 = dma.hbm_to_vmem [thread:$0]  %s0, 128, %s21, [#allocation3]
    $region5: #{tpu_custom_call.1} parent=1 // pred_fallthru
      _
    // Predicated region
    $region6: #{tpu_custom_call.1} parent=1 // pred_check
      _
    $region7: #{tpu_custom_call.1} parent=1 // pred_check_branch
      %25 = sbr.rel (0) target = $region9
    $region8: #{tpu_custom_call.1} parent=1 // pred_region
      %s27 = ssub.s32 256, 256
      %28 = vsyncadd [#allocation6], %s27
      %s30 = sshll.u32 [#allocation5], 4
      %s31 = int_to_ptr.vmem [resolvable:$true] %s30
      %33 = dma.hbm_to_vmem [thread:$0]  %s1, 256, %s31, [#allocation6]
    $region9: #{tpu_custom_call.1} parent=1 // pred_fallthru
      _
    // Predicated region
    $region10: #{tpu_custom_call.1} parent=1 // pred_check
      _
    $region11: #{tpu_custom_call.1} parent=1 // pred_check_branch
      %35 = sbr.rel (0) target = $region13
    $region12: #{tpu_custom_call.1} parent=1 // pred_region
      %s37 = ssub.s32 1024, 1024
      %38 = vsyncadd [#allocation6], %s37
      %s39 = sshll.u32 [#allocation7], 4
      %s40 = int_to_ptr.vmem [resolvable:$true] %s39
      %45 = dma.hbm_to_vmem [thread:$0]  %s2, 1024, %s40, [#allocation6], 256, 256, 16
    $region13: #{tpu_custom_call.1} parent=1 // pred_fallthru
      _
    // Predicated region
    $region14: #{tpu_custom_call.1} parent=1 // pred_check
      _
    $region15: #{tpu_custom_call.1} parent=1 // pred_check_branch
      %47 = sbr.rel (0) target = $region17
    $region16: #{tpu_custom_call.1} parent=1 // pred_region
      _
    $region17: #{tpu_custom_call.1} parent=1 // pred_fallthru
      _
    // Predicated region
    $region18: #{tpu_custom_call.1} parent=1 // pred_check
      _
    $region19: #{tpu_custom_call.1} parent=1 // pred_check_branch
      %49 = sbr.rel (0) target = $region21
    $region20: #{tpu_custom_call.1} parent=1 // pred_region
      %s51 = ssub.s32 128, 128
      %52 = vsyncadd [#allocation9], %s51
      %s54 = sshll.u32 [#allocation8], 4
      %s55 = int_to_ptr.vmem [resolvable:$true] %s54
      %57 = dma.hbm_to_vmem [thread:$0]  %s4, 128, %s55, [#allocation9]
    $region21: #{tpu_custom_call.1} parent=1 // pred_fallthru
      _
    // Predicated region
    $region22: #{tpu_custom_call.1} parent=1 // pred_check
      _
    $region23: #{tpu_custom_call.1} parent=1 // pred_check_branch
      %59 = sbr.rel (0) target = $region25
    $region24: #{tpu_custom_call.1} parent=1 // pred_region
      %60 = dma.done [#allocation3], 128
    $region25: #{tpu_custom_call.1} parent=1 // pred_fallthru
      _
    // Predicated region
    $region26: #{tpu_custom_call.1} parent=1 // pred_check
      _
    $region27: #{tpu_custom_call.1} parent=1 // pred_check_branch
      %62 = sbr.rel (0) target = $region29
    $region28: #{tpu_custom_call.1} parent=1 // pred_region
      %63 = dma.done [#allocation6], 256
    $region29: #{tpu_custom_call.1} parent=1 // pred_fallthru
      _
    // Predicated region
    $region30: #{tpu_custom_call.1} parent=1 // pred_check
      _
    $region31: #{tpu_custom_call.1} parent=1 // pred_check_branch
      %65 = sbr.rel (0) target = $region33
    $region32: #{tpu_custom_call.1} parent=1 // pred_region
      %66 = dma.done [#allocation6], 1024
    $region33: #{tpu_custom_call.1} parent=1 // pred_fallthru
      _
    // Predicated region
    $region34: #{tpu_custom_call.1} parent=1 // pred_check
      _
    $region35: #{tpu_custom_call.1} parent=1 // pred_check_branch
      %68 = sbr.rel (0) target = $region37
    $region36: #{tpu_custom_call.1} parent=1 // pred_region
      %69 = dma.done [#allocation9], 128
    $region37: #{tpu_custom_call.1} parent=1 // pred_fallthru
      _
    %v70 = vld [vmem:[#allocation2] sm:$0xff]
    %v71 = vld [vmem:[#allocation7] sm:$0xff]
    %v72 = vld [vmem:[#allocation7 + $0x8] sm:$0xff]
    %v73 = vld [vmem:[#allocation7 + $0x10] sm:$0xff]
    %v74 = vld [vmem:[#allocation7 + $0x18] sm:$0xff]
    %v75 = vld [vmem:[#allocation7 + $0x20] sm:$0xff]
    %v76 = vld [vmem:[#allocation7 + $0x28] sm:$0xff]
    %v77 = vld [vmem:[#allocation7 + $0x30] sm:$0xff]
    %v78 = vld [vmem:[#allocation7 + $0x38] sm:$0xff]
    %v79 = vld [vmem:[#allocation5] sm:$0xff]
    %v80 = vld [vmem:[#allocation5 + $0x8] sm:$0xff]
    %vm81 = vcmask 261120
    %v83 = vsel %vm81, %v70, 0
    %85 = vmatprep.subr.mxu0 %v72
    %86 = vmatpush1.msra.mxu0 %v71
    %87 = vmatprep.subr.mxu0 %v74
    %88 = vmatpush1.msra.mxu0 %v73
    %89 = vmatprep.subr.mxu0 %v76
    %90 = vmatpush1.msra.mxu0 %v75
    %91 = vmatprep.subr.mxu0 %v78
    %92 = vmatpush1.msra.mxu0 %v77
    %93 = vmatprep.subr.mxu0 0.0
    %94 = vmatpush1.msra.mxu0 0.0
    %95 = vmatprep.subr.mxu0 0.0
    %96 = vmatpush1.msra.mxu0 0.0
    %97 = vmatprep.subr.mxu0 0.0
    %98 = vmatpush1.msra.mxu0 0.0
    %99 = vmatprep.subr.mxu0 0.0
    %100 = vmatpush1.msra.mxu0 0.0
    %101 = vmatprep.subr.mxu0 0.0
    %102 = vmatpush1.msra.mxu0 0.0
    %103 = vmatprep.subr.mxu0 0.0
    %104 = vmatpush1.msra.mxu0 0.0
    %105 = vmatprep.subr.mxu0 0.0
    %106 = vmatpush1.msra.mxu0 0.0
    %107 = vmatprep.subr.mxu0 0.0
    %108 = vmatpush1.msra.mxu0 0.0
    %109 = vmatprep.subr.mxu0 0.0
    %110 = vmatpush1.msra.mxu0 0.0
    %111 = vmatprep.subr.mxu0 0.0
    %112 = vmatpush1.msra.mxu0 0.0
    %113 = vmatprep.subr.mxu0 0.0
    %114 = vmatpush1.msra.mxu0 0.0
    %115 = vmatprep.subr.mxu0 0.0
    %116 = vmatpush1.msra.mxu0 0.0
    %117 = vmatprep.subr.mxu0 0.0
    %118 = vmatpush1.msra.mxu0 0.0
    %119 = vmatprep.subr.mxu0 0.0
    %120 = vmatpush1.msra.mxu0 0.0
    %121 = vmatprep.subr.mxu0 0.0
    %122 = vmatpush1.msra.mxu0 0.0
    %123 = vmatprep.subr.mxu0 0.0
    %124 = vmatpush1.msra.mxu0 0.0
    %125 = vmatprep.subr.mxu0 0.0
    %126 = vmatpush1.msra.mxu0 0.0
    %127 = vmatprep.subr.mxu0 0.0
    %128 = vmatpush1.msra.mxu0 0.0
    %129 = vmatprep.subr.mxu0 0.0
    %130 = vmatpush1.msra.mxu0 0.0
    %131 = vmatprep.subr.mxu0 0.0
    %132 = vmatpush1.msra.mxu0 0.0
    %133 = vmatprep.subr.mxu0 0.0
    %134 = vmatpush1.msra.mxu0 0.0
    %135 = vmatprep.subr.mxu0 0.0
    %136 = vmatpush1.msra.mxu0 0.0
    %137 = vmatprep.subr.mxu0 0.0
    %138 = vmatpush1.msra.mxu0 0.0
    %139 = vmatprep.subr.mxu0 0.0
    %140 = vmatpush1.msra.mxu0 0.0
    %141 = vmatprep.subr.mxu0 0.0
    %142 = vmatpush1.msra.mxu0 0.0
    %143 = vmatprep.subr.mxu0 0.0
    %144 = vmatpush1.msra.mxu0 0.0
    %145 = vmatprep.subr.mxu0 0.0
    %146 = vmatpush1.msra.mxu0 0.0
    %147 = vmatprep.subr.mxu0 0.0
    %148 = vmatpush1.msra.mxu0 0.0
    %149 = vmatprep.mubr.f32.mxu0 0.0
    %150 = vmatmul.mubr.f32.gmra.mrb[0].mxu0 %v83
    %v151 = vpop.f32.mrb[0].mxu0
    %v152 = vadd.f32 %v79, %v151
    %v153 = vpop.f32.mrb[0].mxu0
    %v154 = vadd.f32 %v80, %v153
    %155 = vdwg.mxu0
    %v156 = vxor.u32 %v152, 2147483648
    %v157 = vxor.u32 %v154, 2147483648
    %v158 = vmul.f32 %v156, 1.442695
    %v159 = vpow.pop %v158
    %v160 = vmul.f32 %v157, 1.442695
    %v161 = vpow.pop %v160
    %v162 = vadd.f32 %v159, 1.0
    %v163 = vadd.f32 %v161, 1.0
    %v164 = vrcp.pop %v162
    %v165 = vmul.f32 1.0, %v164
    %v166 = vrcp.pop %v163
    %v167 = vmul.f32 1.0, %v166
    %v168 = vtanh.pop %v154
    %vm169 = vcmp.gt.f32.partialorder %v154, 20.0
    %v170 = vmul.f32 %v154, 1.442695
    %v171 = vpow.pop %v170
    %v172 = vadd.f32 %v171, 1.0
    %v173 = vlog2.pop %v172
    %v174 = vmul.f32 %v173, 0.6931472
    %v175 = vmul.f32 -0.5, %v171
    %v176 = vadd.f32 %v175, 1.0
    %v177 = vmul.f32 %v176, %v171
    %v178 = vand.u32 2147483647, %v171
    %vm179 = vcmp.lt.f32.partialorder %v178, 0.0004427343
    %v180 = vsel %vm179, %v177, %v174
    %v181 = vsel %vm169, %v154, %v180
    %v182 = vld [vmem:[%s3] sm:$0xff]
    %184 = vrot.lane.b32.xlu0 %v182, 32
    %v185 = vpop.permute.xlu0 %184
    %v187 = vmul.f32 %v165, %v185
    %189 = vrot.lane.b32.xlu0 %v168, 96
    %v190 = vpop.permute.xlu0 %189
    %v192 = vmul.f32 %v165, %v190
    %194 = vrot.lane.b32.xlu0 %v192, 32
    %v195 = vpop.permute.xlu0 %194
    %v197 = vadd.f32 %v187, %v195
    %v198 = vld [vmem:[#allocation8] sm:$0xff]
    %v199 = vmul.f32 %v167, %v198
    %200 = vrot.lane.b32.xlu0 %v168, 64
    %v201 = vpop.permute.xlu0 %200
    %v203 = vmul.f32 %v165, %v201
    %205 = vrot.lane.b32.xlu0 %v203, 32
    %v206 = vpop.permute.xlu0 %205
    %v208 = vadd.f32 %v199, %v206
    %210 = vrot.lane.b32.xlu0 %v197, 96
    %v211 = vpop.permute.xlu0 %210
    %214 = vrot.lane.b32.xlu0 %v208, 32
    %v215 = vpop.permute.xlu0 %214
    %218 = vrot.lane.b32.xlu0 %v165, 32
    %v219 = vpop.permute.xlu0 %218
    %v221 = vsel %vm81, %v211, %v215
    %vm222 = vcmask 523264
    %v223 = vsel %vm222, %v221, %v181
    %vm224 = vcmask 785408
    %v225 = vsel %vm224, %v223, %v219
    %226 = vst [vmem:[#allocation10] sm:$0xff] %v225
    // Predicated region
    $region38: #{tpu_custom_call.1} parent=1 // pred_check
      _
    $region39: #{tpu_custom_call.1} parent=1 // pred_check_branch
      %228 = sbr.rel (0) target = $region41
    $region40: #{tpu_custom_call.1} parent=1 // pred_region
      %s230 = ssub.s32 128, 128
      %231 = vsyncadd [#allocation4], %s230
      %s233 = sshll.u32 [#allocation10], 4
      %s234 = int_to_ptr.vmem [resolvable:$true] %s233
      %236 = dma.vmem_to_hbm [thread:$0]  %s234, 128, %s5, [#allocation4]
    $region41: #{tpu_custom_call.1} parent=1 // pred_fallthru
      _
    // Predicated region
    $region42: #{tpu_custom_call.1} parent=1 // pred_check
      _
    $region43: #{tpu_custom_call.1} parent=1 // pred_check_branch
      %238 = sbr.rel (0) target = $region45
    $region44: #{tpu_custom_call.1} parent=1 // pred_region
      %239 = dma.done [#allocation4], 128
    $region45: #{tpu_custom_call.1} parent=1 // pred_fallthru
      _
    %240 = vsyncpa [#allocation3], 1
    %241 = vsyncpa [#allocation6], 1
    %242 = vsyncpa [#allocation9], 1
    %243 = vsyncpa [#allocation4], 1

</llo_original>
